<compile_context>
chip_gen: v7x
topology: tpu7x:2x2x1
jax: 0.10.0
libtpu: 0.0.40
codegen_flags: <defaults>
</compile_context>

<pallas_src>
import functools
import math

import jax
import jax.numpy as jnp
from jax.experimental import pallas as pl
from jax.experimental.pallas import tpu as pltpu

_LANE = 128   # logits are padded to a full lane so the final store is unmasked


# ---------------------------------------------------------------------------
# Kernel
# ---------------------------------------------------------------------------
def _head_kernel(h_ref, w1t_ref, b1_ref, w2t_ref, out_ref, acc_ref, *, inv_s):
    # h_ref:   (B_tile, S_tile, H)   encoder hidden states (f32 or bf16)
    # w1t_ref: (H, H)                linear weight, (in, out) layout, resident
    # b1_ref:  (1, H)                linear bias (f32)
    # w2t_ref: (H, C_pad)            output weight, transposed + lane-padded
    # out_ref: (B_tile, C_pad)       padded logits
    # acc_ref: (B_tile, H) f32       sequence-sum accumulator (scratch)
    s = pl.program_id(1)

    @pl.when(s == 0)
    def _():
        acc_ref[...] = jnp.zeros_like(acc_ref)

    # Accumulate the sequence sum in f32 (mean divide deferred to the end).
    acc_ref[...] += jnp.sum(h_ref[...].astype(jnp.float32), axis=1)

    @pl.when(s == pl.num_programs(1) - 1)
    def _():
        encoded = acc_ref[...] * inv_s                         # (B_tile, H) f32 mean
        # Linear(H, H) + bias; MXU accumulates in f32.  (For bf16 weights the
        # pooled mean is downcast here - acceptable for argmax-only logits.)
        ff = jnp.dot(encoded.astype(w1t_ref.dtype), w1t_ref[...],
                     preferred_element_type=jnp.float32)
        ff = ff + b1_ref[...].astype(jnp.float32)
        # Exact GELU (nn.GELU default): 0.5*x*(1+erf(x/sqrt(2))).
        ff = 0.5 * ff * (1.0 + jax.lax.erf(ff * (1.0 / math.sqrt(2.0))))
        # Linear(H, num_classes, bias=False), lane-padded output columns.
        logits = jnp.dot(ff.astype(w2t_ref.dtype), w2t_ref[...],
                         preferred_element_type=jnp.float32)
        out_ref[...] = logits.astype(out_ref.dtype)


# ---------------------------------------------------------------------------
# Parameter preprocessing (one-time, hoisted out of the per-call path)
# ---------------------------------------------------------------------------
def prepare_params(w1, b1, w2, lane_pad=_LANE):
    """w1: (H, H), b1: (H,), w2: (C, H) in torch.nn.Linear (out, in) layout."""
    H = w1.shape[0]
    C = w2.shape[0]
    w1t = jnp.transpose(w1)                       # (H, H) = (in, out)
    b1r = jnp.reshape(b1, (1, H)).astype(jnp.float32)
    w2t = jnp.transpose(w2)                       # (H, C)
    pad = max(lane_pad, C) - C
    w2t_pad = jnp.pad(w2t, ((0, 0), (0, pad)))    # (H, C_pad), zero-padded
    return w1t, b1r, w2t_pad, C


# ---------------------------------------------------------------------------
# Tiling helpers
# ---------------------------------------------------------------------------
def _round_up(x, m):
    return ((x + m - 1) // m) * m


def _cdiv(a, b):
    return -(-a // b)


def _sublane_granularity(dtype):
    # f32 -> 8, bf16 -> 16, int8/fp8 -> 32 (packed sublane tiles).
    return max(8, 32 // jnp.dtype(dtype).itemsize)


def _vmem_config():
    """Generation-aware (budget, vmem_limit_bytes)."""
    cap = 64 * 1024 * 1024
    try:
        cap = int(getattr(pltpu.get_tpu_info(), "vmem_capacity_bytes", cap))
    except Exception:
        pass
    if cap >= 100 * 1024 * 1024:
        # v5e / v6e: 128 MiB physical VMEM -> use most of it for streaming.
        return 88 * 1024 * 1024, 104 * 1024 * 1024
    # v7x-class (64 MiB physical) or unknown: stay conservative.
    return 28 * 1024 * 1024, 48 * 1024 * 1024


def _fixed_vmem_bytes(H, C_pad, w_bytes, b_tile, weight_bufs):
    return (weight_bufs * H * H * w_bytes          # W1
            + weight_bufs * H * C_pad * w_bytes    # W2 (lane padded)
            + weight_bufs * 8 * H * 4              # bias (sublane-padded, f32)
            + b_tile * H * 4                       # f32 accumulator scratch
            + 2 * b_tile * C_pad * 4)              # output block (2 buffers)


def _pick_b_tile(B, cap=64, min_parallel_tiles=2):
    if B < min_parallel_tiles * 8:
        # Single full-B tile: legal (block dim == full array dim) and avoids
        # streaming padded dummy batch rows for tiny batches.
        return B
    # Multiple-of-8 tile, minimal batch padding, then largest tile; require
    # >=2 tiles so the "parallel" grid axis can shard across v7x's 2 TCs.
    best, best_pad = 8, _round_up(B, 8)
    bt = 8
    while bt <= min(cap, _round_up(B, 8)):
        pad = _round_up(B, bt)
        if pad // bt >= min_parallel_tiles and (
                pad < best_pad or (pad == best_pad and bt > best)):
            best, best_pad = bt, pad
        bt += 8
    return best


def _pick_s_tile(S, gran, per_row_bytes, avail_bytes):
    """Largest multiple-of-`gran` S tile that fits, balancing padding waste."""
    s_full = _round_up(S, gran)
    max_rows = (avail_bytes // per_row_bytes // gran) * gran
    if max_rows < gran:
        return None
    if max_rows >= s_full:
        return s_full                              # single S step
    n_steps = _cdiv(s_full, max_rows)
    return _round_up(_cdiv(s_full, n_steps), gran)


# ---------------------------------------------------------------------------
# Wrapper
# ---------------------------------------------------------------------------
def classifier_head(hidden_states, params, out_dtype=jnp.float32,
                    b_tile=None, s_tile=None):
    """hidden_states: (B, S, H); params from prepare_params(). Returns (B, C)."""
    w1t, b1r, w2t_pad, num_classes = params
    B, S, H = hidden_states.shape
    C_pad = w2t_pad.shape[1]

    in_bytes = jnp.dtype(hidden_states.dtype).itemsize
    w_bytes = jnp.dtype(w1t.dtype).itemsize
    gran = _sublane_granularity(hidden_states.dtype)
    budget, vmem_limit = _vmem_config()

    # Per sequence-row VMEM: double-buffered native-dtype stream, plus the f32
    # working set of the convert+reduce when the input is narrower than f32.
    def per_row(bt):
        return bt * H * (2 * in_bytes + (4 if in_bytes < 4 else 0))

    if b_tile is None:
        b_tile = _pick_b_tile(B)
    elif b_tile != B:
        b_tile = _round_up(max(int(b_tile), 1), 8)   # hints are legalized

    weight_bufs = 1   # weights are single-buffered via pl.Buffered(1)

    # Hard VMEM guard: shrink b_tile until the fixed footprint plus the
    # smallest legal hidden_states tile fits; fail loudly otherwise.
    while (_fixed_vmem_bytes(H, C_pad, w_bytes, b_tile, weight_bufs)
           + gran * per_row(b_tile) > budget) and b_tile > 8:
        b_tile = max(8, _round_up(b_tile // 2, 8))
    fixed = _fixed_vmem_bytes(H, C_pad, w_bytes, b_tile, weight_bufs)
    if fixed + gran * per_row(b_tile) > budget:
        # TODO(synk): fall back to memory_space=pl.ANY weights + manual DMA
        # instead of failing for very large hidden sizes.
        raise ValueError(
            f"hidden_size={H} does not fit the VMEM budget ({budget} bytes) "
            "even with the minimal tile; manual weight DMA path not implemented.")

    if s_tile is None:
        s_tile = _pick_s_tile(S, gran, per_row(b_tile), budget - fixed)
        if s_tile is None:
            raise ValueError("could not find a legal S tile within VMEM budget")
    else:
        s_tile = _round_up(max(int(s_tile), 1), gran)

    # Zero-pad B/S in the wrapper: padded seq rows contribute 0 to the sum
    # (mean divides by the true S); padded batch rows are sliced off.
    B_pad = _round_up(B, b_tile)
    S_pad = _round_up(S, s_tile)
    if (B_pad, S_pad) != (B, S):
        hidden_states = jnp.pad(
            hidden_states, ((0, B_pad - B), (0, S_pad - S), (0, 0)))

    grid = (B_pad // b_tile, S_pad // s_tile)
    kernel = functools.partial(_head_kernel, inv_s=1.0 / S)

    cost = pl.CostEstimate(
        flops=int(B_pad * S_pad * H + 2 * B_pad * H * H + 2 * B_pad * H * C_pad),
        transcendentals=int(B_pad * H),
        bytes_accessed=int(B_pad * S_pad * H * in_bytes + H * H * w_bytes
                           + H * C_pad * w_bytes + H * 4 + B_pad * C_pad * 4),
    )

    def _call(single_buffer_weights):
        w_kwargs = ({"pipeline_mode": pl.Buffered(1)}
                    if single_buffer_weights else {})
        in_specs = [
            # NOTE(v5e): if profiles show DMA gaps between steps, this stream
            # spec can additionally use pipeline_mode=pl.Buffered(3).
            pl.BlockSpec((b_tile, s_tile, H), lambda b, s: (b, s, 0)),
            pl.BlockSpec((H, H), lambda b, s: (0, 0), **w_kwargs),      # W1
            pl.BlockSpec((1, H), lambda b, s: (0, 0), **w_kwargs),      # bias
            pl.BlockSpec((H, C_pad), lambda b, s: (0, 0), **w_kwargs),  # W2
        ]
        out_specs = pl.BlockSpec((b_tile, C_pad), lambda b, s: (b, 0))
        return pl.pallas_call(
            kernel,
            out_shape=jax.ShapeDtypeStruct((B_pad, C_pad), out_dtype),
            grid_spec=pltpu.PrefetchScalarGridSpec(
                num_scalar_prefetch=0,
                grid=grid,
                in_specs=in_specs,
                out_specs=out_specs,
                scratch_shapes=[pltpu.VMEM((b_tile, H), jnp.float32)],
            ),
            compiler_params=pltpu.CompilerParams(
                dimension_semantics=("parallel", "arbitrary"),
                vmem_limit_bytes=vmem_limit,
            ),
            cost_estimate=cost,
        )(hidden_states, w1t, b1r, w2t_pad)

    try:
        logits_pad = _call(True)
    except Exception:
        # pipeline_mode=pl.Buffered(1) not supported by this jax build; fall
        # back to default double-buffered (still constant-index) weights.
        logits_pad = _call(False)

    return logits_pad[:B, :num_classes]


# ---------------------------------------------------------------------------
# Reference / init helpers
# ---------------------------------------------------------------------------
def xavier_uniform(key, shape):
    fan_out, fan_in = shape
    bound = math.sqrt(6.0 / (fan_in + fan_out))
    return jax.random.uniform(key, shape, minval=-bound, maxval=bound,
                              dtype=jnp.float32)


def _reference(hidden_states, w1, b1, w2):
    enc = jnp.mean(hidden_states.astype(jnp.float32), axis=1)
    ff = enc @ w1.T + b1
    ff = 0.5 * ff * (1.0 + jax.lax.erf(ff / math.sqrt(2.0)))
    return ff @ w2.T


if __name__ == "__main__":
    key = jax.random.PRNGKey(0)
    k_h, k_w1, k_w2, k_h2 = jax.random.split(key, 4)

    # Small, module-consistent shapes: batch=2, seq=8, hidden=32, classes=2.
    B, S, H = 2, 8, 32
    hidden_states = jax.random.normal(k_h, (B, S, H), dtype=jnp.float32)

    # Parameter init mirroring __init__: xavier_uniform weights, zero bias.
    w1 = xavier_uniform(k_w1, (H, H))
    b1 = jnp.zeros((H,), dtype=jnp.float32)
    w2 = xavier_uniform(k_w2, (2, H))
    params = prepare_params(w1, b1, w2)

    # --- f32 path, single grid step (full-B tile, full-S tile) ---
    logits = jax.block_until_ready(classifier_head(hidden_states, params))
    prediction = jax.block_until_ready(jnp.argmax(logits, axis=1))  # 'eval' mode
    ref_logits = _reference(hidden_states, w1, b1, w2)
    assert logits.shape == (B, 2)
    assert prediction.shape == (B,)
    assert jnp.allclose(logits, ref_logits, atol=1e-5, rtol=1e-5)

    # --- multi-tile grid: 2 parallel B tiles (batch padded 10->16) and a
    #     multi-step S reduction exercising the f32 accumulator ---
    B2, S2 = 10, 24
    hs2 = jax.random.normal(k_h2, (B2, S2, H), dtype=jnp.float32)
    logits2 = jax.block_until_ready(
        classifier_head(hs2, params, b_tile=8, s_tile=8))
    ref2 = _reference(hs2, w1, b1, w2)
    assert logits2.shape == (B2, 2)
    assert jnp.allclose(logits2, ref2, atol=1e-5, rtol=1e-5)

    # --- bf16 activations/weights end-to-end (f32 accumulation inside kernel),
    #     dtype-aware 16-row S tiles with S padded 24 -> 32 ---
    params_bf16 = prepare_params(w1.astype(jnp.bfloat16), b1,
                                 w2.astype(jnp.bfloat16))
    logits_bf16 = jax.block_until_ready(
        classifier_head(hs2.astype(jnp.bfloat16), params_bf16,
                        b_tile=8, s_tile=16))
    assert jnp.allclose(logits_bf16, ref2, atol=1e-1, rtol=1e-1)

    print("KERNEL_OK")
</pallas_src>

<mosaic_0001>
module attributes {stable_mosaic.version = 11 : i64} {
  func.func @_head_kernel(%arg0: i32, %arg1: i32, %arg2: memref<2x8x32xf32, #tpu.memory_space<vmem>>, %arg3: memref<32x32xf32, #tpu.memory_space<vmem>>, %arg4: memref<1x32xf32, #tpu.memory_space<vmem>>, %arg5: memref<32x128xf32, #tpu.memory_space<vmem>>, %arg6: memref<2x128xf32, #tpu.memory_space<vmem>>, %arg7: memref<2x32xf32, #tpu.memory_space<vmem>>) attributes {dimension_semantics = [#tpu.dimension_semantics<parallel>, #tpu.dimension_semantics<arbitrary>], iteration_bounds = array<i64: 1, 1>, scalar_prefetch = 0 : i64, scratch_operands = 1 : i64, tpu.core_type = #tpu.core_type<tc>, window_params = [{transform_indices = @transform_0, window_bounds = array<i64: 2, 8, 32>}, {pipeline_mode = #tpu.pipeline_mode<synchronous>, transform_indices = @transform_1, window_bounds = array<i64: 32, 32>}, {pipeline_mode = #tpu.pipeline_mode<synchronous>, transform_indices = @transform_2, window_bounds = array<i64: 1, 32>}, {pipeline_mode = #tpu.pipeline_mode<synchronous>, transform_indices = @transform_3, window_bounds = array<i64: 32, 128>}, {transform_indices = @transform_4, window_bounds = array<i64: 2, 128>}]} {
    %c0_i32 = arith.constant 0 : i32
    %0 = arith.cmpi eq, %arg1, %c0_i32 : i32
    %1 = arith.extui %0 : i1 to i32
    %c0_i32_0 = arith.constant 0 : i32
    %2 = arith.cmpi ne, %1, %c0_i32_0 : i32
    scf.if %2 {
      %cst_9 = arith.constant 0.000000e+00 : f32
      %11 = vector.broadcast %cst_9 : f32 to vector<2x32xf32>
      %c0_10 = arith.constant 0 : index
      %c0_11 = arith.constant 0 : index
      %12 = vector.load %arg7[%c0_10, %c0_11] : memref<2x32xf32, #tpu.memory_space<vmem>>, vector<2x32xf32>
      tpu.vector_store %arg7[%c0_10, %c0_11], %11 {strides = array<i32>} : memref<2x32xf32, #tpu.memory_space<vmem>>, vector<2x32xf32>,
    } else {
    }
    %c0 = arith.constant 0 : index
    %c0_1 = arith.constant 0 : index
    %3 = vector.load %arg7[%c0, %c0_1] : memref<2x32xf32, #tpu.memory_space<vmem>>, vector<2x32xf32>
    %c0_2 = arith.constant 0 : index
    %c0_3 = arith.constant 0 : index
    %c0_4 = arith.constant 0 : index
    %4 = vector.load %arg2[%c0_2, %c0_3, %c0_4] : memref<2x8x32xf32, #tpu.memory_space<vmem>>, vector<2x8x32xf32>
    %cst = arith.constant dense<0.000000e+00> : vector<2x32xf32>
    %5 = vector.multi_reduction <add>, %4, %cst [1] : vector<2x8x32xf32> to vector<2x32xf32>
    %6 = arith.addf %3, %5 : vector<2x32xf32>
    %c0_5 = arith.constant 0 : index
    %c0_6 = arith.constant 0 : index
    %7 = vector.load %arg7[%c0_5, %c0_6] : memref<2x32xf32, #tpu.memory_space<vmem>>, vector<2x32xf32>
    tpu.vector_store %arg7[%c0_5, %c0_6], %6 {strides = array<i32>} : memref<2x32xf32, #tpu.memory_space<vmem>>, vector<2x32xf32>,
    %c0_i32_7 = arith.constant 0 : i32
    %8 = arith.cmpi eq, %arg1, %c0_i32_7 : i32
    %9 = arith.extui %8 : i1 to i32
    %c0_i32_8 = arith.constant 0 : i32
    %10 = arith.cmpi ne, %9, %c0_i32_8 : i32
    scf.if %10 {
      %c0_9 = arith.constant 0 : index
      %c0_10 = arith.constant 0 : index
      %11 = vector.load %arg7[%c0_9, %c0_10] : memref<2x32xf32, #tpu.memory_space<vmem>>, vector<2x32xf32>
      %cst_11 = arith.constant 1.250000e-01 : f32
      %12 = vector.broadcast %cst_11 : f32 to vector<2x32xf32>
      %13 = arith.mulf %11, %12 : vector<2x32xf32>
      %c0_12 = arith.constant 0 : index
      %c0_13 = arith.constant 0 : index
      %14 = vector.load %arg3[%c0_12, %c0_13] : memref<32x32xf32, #tpu.memory_space<vmem>>, vector<32x32xf32>
      %cst_14 = arith.constant dense<0.000000e+00> : vector<2x32xf32>
      %15 = tpu.matmul %13, %14, %cst_14 {dimension_numbers = #tpu.dot_dimension_numbers<[1], [0], [0], [1], [0, 0, 1, 1], [], []>} : vector<2x32xf32>, vector<32x32xf32>, vector<2x32xf32> -> vector<2x32xf32>
      %c0_15 = arith.constant 0 : index
      %c0_16 = arith.constant 0 : index
      %16 = vector.load %arg4[%c0_15, %c0_16] : memref<1x32xf32, #tpu.memory_space<vmem>>, vector<1x32xf32>
      %17 = vector.broadcast %16 : vector<1x32xf32> to vector<2x32xf32>
      %18 = arith.addf %15, %17 : vector<2x32xf32>
      %cst_17 = arith.constant 5.000000e-01 : f32
      %19 = vector.broadcast %cst_17 : f32 to vector<2x32xf32>
      %20 = arith.mulf %19, %18 : vector<2x32xf32>
      %cst_18 = arith.constant 0.707106769 : f32
      %21 = vector.broadcast %cst_18 : f32 to vector<2x32xf32>
      %22 = arith.mulf %18, %21 : vector<2x32xf32>
      %23 = math.erf %22 : vector<2x32xf32>
      %cst_19 = arith.constant 1.000000e+00 : f32
      %24 = vector.broadcast %cst_19 : f32 to vector<2x32xf32>
      %25 = arith.addf %24, %23 : vector<2x32xf32>
      %26 = arith.mulf %20, %25 : vector<2x32xf32>
      %c0_20 = arith.constant 0 : index
      %c0_21 = arith.constant 0 : index
      %27 = vector.load %arg5[%c0_20, %c0_21] : memref<32x128xf32, #tpu.memory_space<vmem>>, vector<32x128xf32>
      %cst_22 = arith.constant dense<0.000000e+00> : vector<2x128xf32>
      %28 = tpu.matmul %26, %27, %cst_22 {dimension_numbers = #tpu.dot_dimension_numbers<[1], [0], [0], [1], [0, 0, 1, 1], [], []>} : vector<2x32xf32>, vector<32x128xf32>, vector<2x128xf32> -> vector<2x128xf32>
      %c0_23 = arith.constant 0 : index
      %c0_24 = arith.constant 0 : index
      %29 = vector.load %arg6[%c0_23, %c0_24] : memref<2x128xf32, #tpu.memory_space<vmem>>, vector<2x128xf32>
      tpu.vector_store %arg6[%c0_23, %c0_24], %28 {strides = array<i32>} : memref<2x128xf32, #tpu.memory_space<vmem>>, vector<2x128xf32>,
    } else {
    }
    return
  }
  func.func @transform_0(%arg0: i32, %arg1: i32) -> (i32, i32, i32) {
    %c0_i32 = arith.constant 0 : i32
    %c0_i32_0 = arith.constant 0 : i32
    return %arg0, %arg1, %c0_i32 : i32, i32, i32
  }
  func.func @transform_1(%arg0: i32, %arg1: i32) -> (i32, i32) {
    %c0_i32 = arith.constant 0 : i32
    %c0_i32_0 = arith.constant 0 : i32
    %c0_i32_1 = arith.constant 0 : i32
    return %c0_i32, %c0_i32_0 : i32, i32
  }
  func.func @transform_2(%arg0: i32, %arg1: i32) -> (i32, i32) {
    %c0_i32 = arith.constant 0 : i32
    %c0_i32_0 = arith.constant 0 : i32
    %c0_i32_1 = arith.constant 0 : i32
    return %c0_i32, %c0_i32_0 : i32, i32
  }
  func.func @transform_3(%arg0: i32, %arg1: i32) -> (i32, i32) {
    %c0_i32 = arith.constant 0 : i32
    %c0_i32_0 = arith.constant 0 : i32
    %c0_i32_1 = arith.constant 0 : i32
    return %c0_i32, %c0_i32_0 : i32, i32
  }
  func.func @transform_4(%arg0: i32, %arg1: i32) -> (i32, i32) {
    %c0_i32 = arith.constant 0 : i32
    %c0_i32_0 = arith.constant 0 : i32
    return %arg0, %c0_i32 : i32, i32
  }
}

module attributes {stable_mosaic.version = 11 : i64} {
  func.func @_head_kernel(%arg0: i32, %arg1: i32, %arg2: memref<2x8x32xf32, #tpu.memory_space<vmem>>, %arg3: memref<32x32xf32, #tpu.memory_space<vmem>>, %arg4: memref<1x32xf32, #tpu.memory_space<vmem>>, %arg5: memref<32x128xf32, #tpu.memory_space<vmem>>, %arg6: memref<2x128xf32, #tpu.memory_space<vmem>>, %arg7: memref<2x32xf32, #tpu.memory_space<vmem>>) attributes {dimension_semantics = [#tpu.dimension_semantics<parallel>, #tpu.dimension_semantics<arbitrary>], iteration_bounds = array<i64: 1, 1>, scalar_prefetch = 0 : i64, scratch_operands = 1 : i64, tpu.core_type = #tpu.core_type<tc>, window_params = [{transform_indices = @transform_0, window_bounds = array<i64: 2, 8, 32>}, {pipeline_mode = #tpu.pipeline_mode<synchronous>, transform_indices = @transform_1, window_bounds = array<i64: 32, 32>}, {pipeline_mode = #tpu.pipeline_mode<synchronous>, transform_indices = @transform_2, window_bounds = array<i64: 1, 32>}, {pipeline_mode = #tpu.pipeline_mode<synchronous>, transform_indices = @transform_3, window_bounds = array<i64: 32, 128>}, {transform_indices = @transform_4, window_bounds = array<i64: 2, 128>}]} {
    %c0_i32 = arith.constant 0 : i32
    %0 = arith.cmpi eq, %arg1, %c0_i32 : i32
    %1 = arith.extui %0 : i1 to i32
    %c0_i32_0 = arith.constant 0 : i32
    %2 = arith.cmpi ne, %1, %c0_i32_0 : i32
    scf.if %2 {
      %cst_9 = arith.constant 0.000000e+00 : f32
      %11 = vector.broadcast %cst_9 : f32 to vector<2x32xf32>
      %c0_10 = arith.constant 0 : index
      %c0_11 = arith.constant 0 : index
      %12 = vector.load %arg7[%c0_10, %c0_11] : memref<2x32xf32, #tpu.memory_space<vmem>>, vector<2x32xf32>
      tpu.vector_store %arg7[%c0_10, %c0_11], %11 {strides = array<i32>} : memref<2x32xf32, #tpu.memory_space<vmem>>, vector<2x32xf32>,
    } else {
    }
    %c0 = arith.constant 0 : index
    %c0_1 = arith.constant 0 : index
    %3 = vector.load %arg7[%c0, %c0_1] : memref<2x32xf32, #tpu.memory_space<vmem>>, vector<2x32xf32>
    %c0_2 = arith.constant 0 : index
    %c0_3 = arith.constant 0 : index
    %c0_4 = arith.constant 0 : index
    %4 = vector.load %arg2[%c0_2, %c0_3, %c0_4] : memref<2x8x32xf32, #tpu.memory_space<vmem>>, vector<2x8x32xf32>
    %cst = arith.constant dense<0.000000e+00> : vector<2x32xf32>
    %5 = vector.multi_reduction <add>, %4, %cst [1] : vector<2x8x32xf32> to vector<2x32xf32>
    %6 = arith.addf %3, %5 : vector<2x32xf32>
    %c0_5 = arith.constant 0 : index
    %c0_6 = arith.constant 0 : index
    %7 = vector.load %arg7[%c0_5, %c0_6] : memref<2x32xf32, #tpu.memory_space<vmem>>, vector<2x32xf32>
    tpu.vector_store %arg7[%c0_5, %c0_6], %6 {strides = array<i32>} : memref<2x32xf32, #tpu.memory_space<vmem>>, vector<2x32xf32>,
    %c0_i32_7 = arith.constant 0 : i32
    %8 = arith.cmpi eq, %arg1, %c0_i32_7 : i32
    %9 = arith.extui %8 : i1 to i32
    %c0_i32_8 = arith.constant 0 : i32
    %10 = arith.cmpi ne, %9, %c0_i32_8 : i32
    scf.if %10 {
      %c0_9 = arith.constant 0 : index
      %c0_10 = arith.constant 0 : index
      %11 = vector.load %arg7[%c0_9, %c0_10] : memref<2x32xf32, #tpu.memory_space<vmem>>, vector<2x32xf32>
      %cst_11 = arith.constant 1.250000e-01 : f32
      %12 = vector.broadcast %cst_11 : f32 to vector<2x32xf32>
      %13 = arith.mulf %11, %12 : vector<2x32xf32>
      %c0_12 = arith.constant 0 : index
      %c0_13 = arith.constant 0 : index
      %14 = vector.load %arg3[%c0_12, %c0_13] : memref<32x32xf32, #tpu.memory_space<vmem>>, vector<32x32xf32>
      %cst_14 = arith.constant dense<0.000000e+00> : vector<2x32xf32>
      %15 = tpu.matmul %13, %14, %cst_14 {dimension_numbers = #tpu.dot_dimension_numbers<[1], [0], [0], [1], [0, 0, 1, 1], [], []>} : vector<2x32xf32>, vector<32x32xf32>, vector<2x32xf32> -> vector<2x32xf32>
      %c0_15 = arith.constant 0 : index
      %c0_16 = arith.constant 0 : index
      %16 = vector.load %arg4[%c0_15, %c0_16] : memref<1x32xf32, #tpu.memory_space<vmem>>, vector<1x32xf32>
      %17 = vector.broadcast %16 : vector<1x32xf32> to vector<2x32xf32>
      %18 = arith.addf %15, %17 : vector<2x32xf32>
      %cst_17 = arith.constant 5.000000e-01 : f32
      %19 = vector.broadcast %cst_17 : f32 to vector<2x32xf32>
      %20 = arith.mulf %19, %18 : vector<2x32xf32>
      %cst_18 = arith.constant 0.707106769 : f32
      %21 = vector.broadcast %cst_18 : f32 to vector<2x32xf32>
      %22 = arith.mulf %18, %21 : vector<2x32xf32>
      %23 = math.erf %22 : vector<2x32xf32>
      %cst_19 = arith.constant 1.000000e+00 : f32
      %24 = vector.broadcast %cst_19 : f32 to vector<2x32xf32>
      %25 = arith.addf %24, %23 : vector<2x32xf32>
      %26 = arith.mulf %20, %25 : vector<2x32xf32>
      %c0_20 = arith.constant 0 : index
      %c0_21 = arith.constant 0 : index
      %27 = vector.load %arg5[%c0_20, %c0_21] : memref<32x128xf32, #tpu.memory_space<vmem>>, vector<32x128xf32>
      %cst_22 = arith.constant dense<0.000000e+00> : vector<2x128xf32>
      %28 = tpu.matmul %26, %27, %cst_22 {dimension_numbers = #tpu.dot_dimension_numbers<[1], [0], [0], [1], [0, 0, 1, 1], [], []>} : vector<2x32xf32>, vector<32x128xf32>, vector<2x128xf32> -> vector<2x128xf32>
      %c0_23 = arith.constant 0 : index
      %c0_24 = arith.constant 0 : index
      %29 = vector.load %arg6[%c0_23, %c0_24] : memref<2x128xf32, #tpu.memory_space<vmem>>, vector<2x128xf32>
      tpu.vector_store %arg6[%c0_23, %c0_24], %28 {strides = array<i32>} : memref<2x128xf32, #tpu.memory_space<vmem>>, vector<2x128xf32>,
    } else {
    }
    return
  }
  func.func @transform_0(%arg0: i32, %arg1: i32) -> (i32, i32, i32) {
    %c0_i32 = arith.constant 0 : i32
    %c0_i32_0 = arith.constant 0 : i32
    return %arg0, %arg1, %c0_i32 : i32, i32, i32
  }
  func.func @transform_1(%arg0: i32, %arg1: i32) -> (i32, i32) {
    %c0_i32 = arith.constant 0 : i32
    %c0_i32_0 = arith.constant 0 : i32
    %c0_i32_1 = arith.constant 0 : i32
    return %c0_i32, %c0_i32_0 : i32, i32
  }
  func.func @transform_2(%arg0: i32, %arg1: i32) -> (i32, i32) {
    %c0_i32 = arith.constant 0 : i32
    %c0_i32_0 = arith.constant 0 : i32
    %c0_i32_1 = arith.constant 0 : i32
    return %c0_i32, %c0_i32_0 : i32, i32
  }
  func.func @transform_3(%arg0: i32, %arg1: i32) -> (i32, i32) {
    %c0_i32 = arith.constant 0 : i32
    %c0_i32_0 = arith.constant 0 : i32
    %c0_i32_1 = arith.constant 0 : i32
    return %c0_i32, %c0_i32_0 : i32, i32
  }
  func.func @transform_4(%arg0: i32, %arg1: i32) -> (i32, i32) {
    %c0_i32 = arith.constant 0 : i32
    %c0_i32_0 = arith.constant 0 : i32
    return %arg0, %c0_i32 : i32, i32
  }
}

</mosaic_0001>

<llo_original>
// kernel: tpu_custom_call.1
$region0: #{tpu_custom_call.1}
  #allocation0 [shape = 'u32[]', space=smem, size = 0x4, offset = 0x4, fixed_abs, tag = 'smem constant byte address 0x4 - core index']
  #allocation1 [shape = 'u32[144,128]{1,0:T(1,128)}', space=vmem, size = 0x12000, scoped, tag = 'internal scratch']
  #allocation2 [shape = 'f32[2,32]{1,0:T(2,128)}', space=vmem, size = 0x400, scoped, tag = 'scratch operand']
  %s0 = inlined_call_operand.hbm [shape: f32[2,8,32], index: 0, kind: input, shape index: {}]
  %s1 = inlined_call_operand.hbm [shape: f32[32,32], index: 1, kind: input, shape index: {}]
  %s2 = inlined_call_operand.vmem [shape: f32[1,32], index: 2, kind: input, shape index: {}]
  %s3 = inlined_call_operand.hbm [shape: f32[32,128], index: 3, kind: input, shape index: {}]
  %s4 = inlined_call_operand.hbm [shape: f32[2,128], index: 4, kind: output, shape index: {}]
  %s5 = sld [smem:[#allocation0]]
  $region46: #{tpu_custom_call.1} parent=0
    _
  %s7 = ssub.s32 1, %s5
  %s8 = scalar_select 0, %s7, %s5
  $region1: #{tpu_custom_call.1} parent=0
    #allocation3 [shape = 'u8[8192]{0}', space=vmem, size = 0x2000, scoped, tag = 'input window, operand 0, single buffered']
    #allocation4 [shape = 's32[1]{0}', space=sflag, size = 0x4, scoped, tag = 'scoped memory for tpu_custom_call.1']
    #allocation5 [shape = 's32[1]{0}', space=sflag, size = 0x4, scoped, tag = 'scoped memory for tpu_custom_call.1']
    #allocation6 [shape = 'u8[16384]{0}', space=vmem, size = 0x4000, scoped, tag = 'input window, operand 1, single buffered']
    #allocation7 [shape = 's32[1]{0}', space=sflag, size = 0x4, scoped, tag = 'scoped memory for tpu_custom_call.1']
    #allocation8 [shape = 'u8[16384]{0}', space=vmem, size = 0x4000, scoped, tag = 'input window, operand 3, single buffered']
    #allocation9 [shape = 'u8[1024]{0}', space=vmem, size = 0x400, scoped, tag = 'output window, operand 0, single buffered']
    %9 = vsyncpa [#allocation4], 0
    %10 = vsyncpa [#allocation7], 0
    %11 = vsyncpa [#allocation5], 0
    // Predicated region
    $region2: #{tpu_custom_call.1} parent=1 // pred_check
      _
    $region3: #{tpu_custom_call.1} parent=1 // pred_check_branch
      %13 = sbr.rel (0) target = $region5
    $region4: #{tpu_custom_call.1} parent=1 // pred_region
      %s15 = ssub.s32 256, 256
      %16 = vsyncadd [#allocation4], %s15
      %s17 = sshll.u32 [#allocation3], 4
      %s18 = int_to_ptr.vmem [resolvable:$true] %s17
      %23 = dma.hbm_to_vmem [thread:$0]  %s0, 256, %s18, [#allocation4], 128, 128, 8
    $region5: #{tpu_custom_call.1} parent=1 // pred_fallthru
      _
    // Predicated region
    $region6: #{tpu_custom_call.1} parent=1 // pred_check
      _
    $region7: #{tpu_custom_call.1} parent=1 // pred_check_branch
      %25 = sbr.rel (0) target = $region9
    $region8: #{tpu_custom_call.1} parent=1 // pred_region
      %s27 = ssub.s32 512, 512
      %28 = vsyncadd [#allocation7], %s27
      %s29 = sshll.u32 [#allocation6], 4
      %s30 = int_to_ptr.vmem [resolvable:$true] %s29
      %35 = dma.hbm_to_vmem [thread:$0]  %s1, 512, %s30, [#allocation7], 128, 128, 8
    $region9: #{tpu_custom_call.1} parent=1 // pred_fallthru
      _
    // Predicated region
    $region10: #{tpu_custom_call.1} parent=1 // pred_check
      _
    $region11: #{tpu_custom_call.1} parent=1 // pred_check_branch
      %37 = sbr.rel (0) target = $region13
    $region12: #{tpu_custom_call.1} parent=1 // pred_region
      _
    $region13: #{tpu_custom_call.1} parent=1 // pred_fallthru
      _
    // Predicated region
    $region14: #{tpu_custom_call.1} parent=1 // pred_check
      _
    $region15: #{tpu_custom_call.1} parent=1 // pred_check_branch
      %39 = sbr.rel (0) target = $region17
    $region16: #{tpu_custom_call.1} parent=1 // pred_region
      %s41 = ssub.s32 512, 512
      %42 = vsyncadd [#allocation7], %s41
      %s43 = sshll.u32 [#allocation8], 4
      %s44 = int_to_ptr.vmem [resolvable:$true] %s43
      %49 = dma.hbm_to_vmem [thread:$0]  %s3, 512, %s44, [#allocation7], 128, 128, 8
    $region17: #{tpu_custom_call.1} parent=1 // pred_fallthru
      _
    // Predicated region
    $region18: #{tpu_custom_call.1} parent=1 // pred_check
      _
    $region19: #{tpu_custom_call.1} parent=1 // pred_check_branch
      %51 = sbr.rel (0) target = $region21
    $region20: #{tpu_custom_call.1} parent=1 // pred_region
      %52 = dma.done [#allocation4], 256
    $region21: #{tpu_custom_call.1} parent=1 // pred_fallthru
      _
    // Predicated region
    $region22: #{tpu_custom_call.1} parent=1 // pred_check
      _
    $region23: #{tpu_custom_call.1} parent=1 // pred_check_branch
      %54 = sbr.rel (0) target = $region25
    $region24: #{tpu_custom_call.1} parent=1 // pred_region
      %55 = dma.done [#allocation7], 512
    $region25: #{tpu_custom_call.1} parent=1 // pred_fallthru
      _
    // Predicated region
    $region26: #{tpu_custom_call.1} parent=1 // pred_check
      _
    $region27: #{tpu_custom_call.1} parent=1 // pred_check_branch
      %57 = sbr.rel (0) target = $region29
    $region28: #{tpu_custom_call.1} parent=1 // pred_region
      %58 = dma.done [#allocation7], 512
    $region29: #{tpu_custom_call.1} parent=1 // pred_fallthru
      _
    %p59 = scmp.eq.s32.totalorder 0, 0
    // Predicated region
    $region30: #{tpu_custom_call.1} parent=1 // pred_check
      %p60 = pneg %p59
    $region31: #{tpu_custom_call.1} parent=1 // pred_check_branch
      %62 = sbr.rel (%p60) target = $region33
    $region32: #{tpu_custom_call.1} parent=1 // pred_region
      %vm63 = vcmask 254976
      %64 = vst.msk [vmem:[#allocation2] sm:$0x3] %vm63, 0.0
    $region33: #{tpu_custom_call.1} parent=1 // pred_fallthru
      _
    %v65 = vld [vmem:[#allocation2] sm:$0x3]
    %v66 = vld [vmem:[#allocation3] sm:$0xff]
    %v67 = vld [vmem:[#allocation3 + $0x8] sm:$0xff]
    %vm68 = vcmask 261120
    %v69 = vsel %vm68, %v66, 0.0
    %v70 = vrot.slane %v69, 4
    %v71 = vadd.f32 %v69, %v70
    %v72 = vrot.slane %v71, 2
    %v73 = vadd.f32 %v71, %v72
    %v74 = vrot.slane %v73, 1
    %v75 = vadd.f32 %v73, %v74
    %v76 = vsel %vm68, %v67, 0.0
    %v77 = vrot.slane %v76, 4
    %v78 = vadd.f32 %v76, %v77
    %v79 = vrot.slane %v78, 2
    %v80 = vadd.f32 %v78, %v79
    %v81 = vrot.slane %v80, 1
    %v82 = vadd.f32 %v80, %v81
    %vm85 = vcmask 1041409
    %v86 = vsel %vm85, %v82, %v75
    %v88 = vadd.f32 %v65, %v86
    %vm89 = vcmask 254976
    %90 = vst.msk [vmem:[#allocation2] sm:$0x3] %vm89, %v88
    // Predicated region
    $region34: #{tpu_custom_call.1} parent=1 // pred_check
      %p91 = pneg %p59
    $region35: #{tpu_custom_call.1} parent=1 // pred_check_branch
      %93 = sbr.rel (%p91) target = $region37
    $region36: #{tpu_custom_call.1} parent=1 // pred_region
      %v94 = vld [vmem:[#allocation2] sm:$0x3]
      %v95 = vmul.f32 %v94, 0.125
      %v96 = vld [vmem:[#allocation6] sm:$0xff]
      %v97 = vld [vmem:[#allocation6 + $0x8] sm:$0xff]
      %v98 = vld [vmem:[#allocation6 + $0x10] sm:$0xff]
      %v99 = vld [vmem:[#allocation6 + $0x18] sm:$0xff]
      %v100 = vld [vmem:[%s2] sm:$0x1]
      %v102 = vlaneseq
      %v103 = vshrl.u32 %v102, 7
      %v104 = vsub.s32 0, %v103
      %v105 = vrot.slane %v100, %v104
      %v108 = vsel %vm68, %v95, 0
      %110 = vmatprep.subr.mxu0 0.0
      %111 = vmatpush1.msra.mxu0 %v96
      %112 = vmatprep.subr.mxu0 0.0
      %113 = vmatpush1.msra.mxu0 %v97
      %114 = vmatprep.subr.mxu0 0.0
      %115 = vmatpush1.msra.mxu0 %v98
      %116 = vmatprep.subr.mxu0 0.0
      %117 = vmatpush1.msra.mxu0 %v99
      %118 = vmatprep.subr.mxu0 0.0
      %119 = vmatpush1.msra.mxu0 0.0
      %120 = vmatprep.subr.mxu0 0.0
      %121 = vmatpush1.msra.mxu0 0.0
      %122 = vmatprep.subr.mxu0 0.0
      %123 = vmatpush1.msra.mxu0 0.0
      %124 = vmatprep.subr.mxu0 0.0
      %125 = vmatpush1.msra.mxu0 0.0
      %126 = vmatprep.subr.mxu0 0.0
      %127 = vmatpush1.msra.mxu0 0.0
      %128 = vmatprep.subr.mxu0 0.0
      %129 = vmatpush1.msra.mxu0 0.0
      %130 = vmatprep.subr.mxu0 0.0
      %131 = vmatpush1.msra.mxu0 0.0
      %132 = vmatprep.subr.mxu0 0.0
      %133 = vmatpush1.msra.mxu0 0.0
      %134 = vmatprep.subr.mxu0 0.0
      %135 = vmatpush1.msra.mxu0 0.0
      %136 = vmatprep.subr.mxu0 0.0
      %137 = vmatpush1.msra.mxu0 0.0
      %138 = vmatprep.subr.mxu0 0.0
      %139 = vmatpush1.msra.mxu0 0.0
      %140 = vmatprep.subr.mxu0 0.0
      %141 = vmatpush1.msra.mxu0 0.0
      %142 = vmatprep.subr.mxu0 0.0
      %143 = vmatpush1.msra.mxu0 0.0
      %144 = vmatprep.subr.mxu0 0.0
      %145 = vmatpush1.msra.mxu0 0.0
      %146 = vmatprep.subr.mxu0 0.0
      %147 = vmatpush1.msra.mxu0 0.0
      %148 = vmatprep.subr.mxu0 0.0
      %149 = vmatpush1.msra.mxu0 0.0
      %150 = vmatprep.subr.mxu0 0.0
      %151 = vmatpush1.msra.mxu0 0.0
      %152 = vmatprep.subr.mxu0 0.0
      %153 = vmatpush1.msra.mxu0 0.0
      %154 = vmatprep.subr.mxu0 0.0
      %155 = vmatpush1.msra.mxu0 0.0
      %156 = vmatprep.subr.mxu0 0.0
      %157 = vmatpush1.msra.mxu0 0.0
      %158 = vmatprep.subr.mxu0 0.0
      %159 = vmatpush1.msra.mxu0 0.0
      %160 = vmatprep.subr.mxu0 0.0
      %161 = vmatpush1.msra.mxu0 0.0
      %162 = vmatprep.subr.mxu0 0.0
      %163 = vmatpush1.msra.mxu0 0.0
      %164 = vmatprep.subr.mxu0 0.0
      %165 = vmatpush1.msra.mxu0 0.0
      %166 = vmatprep.subr.mxu0 0.0
      %167 = vmatpush1.msra.mxu0 0.0
      %168 = vmatprep.subr.mxu0 0.0
      %169 = vmatpush1.msra.mxu0 0.0
      %170 = vmatprep.subr.mxu0 0.0
      %171 = vmatpush1.msra.mxu0 0.0
      %172 = vmatprep.subr.mxu0 0.0
      %173 = vmatpush1.msra.mxu0 0.0
      %174 = vmatprep.mubr.f32.mxu0 0.0
      %175 = vmatmul.mubr.f32.gmra.mrb[0].mxu0 %v108
      %v176 = vpop.f32.mrb[0].mxu0
      %v177 = vadd.f32 %v105, %v176
      %v178 = vpop.f32.mrb[0].mxu0
      %179 = vdwg.mxu0
      %v180 = vmul.f32 %v177, 0.5
      %v181 = vmul.f32 %v177, 0.70710677
      %v182 = verf.f32.pop %v181
      %v183 = vadd.f32 %v182, 1.0
      %v184 = vmul.f32 %v180, %v183
      %v185 = vld [vmem:[#allocation8] sm:$0xff]
      %v186 = vld [vmem:[#allocation8 + $0x8] sm:$0xff]
      %v187 = vld [vmem:[#allocation8 + $0x10] sm:$0xff]
      %v188 = vld [vmem:[#allocation8 + $0x18] sm:$0xff]
      %v190 = vsel %vm68, %v184, 0
      %192 = vmatprep.subr.mxu0 0.0
      %193 = vmatpush1.msra.mxu0 %v185
      %194 = vmatprep.subr.mxu0 0.0
      %195 = vmatpush1.msra.mxu0 %v186
      %196 = vmatprep.subr.mxu0 0.0
      %197 = vmatpush1.msra.mxu0 %v187
      %198 = vmatprep.subr.mxu0 0.0
      %199 = vmatpush1.msra.mxu0 %v188
      %200 = vmatprep.subr.mxu0 0.0
      %201 = vmatpush1.msra.mxu0 0.0
      %202 = vmatprep.subr.mxu0 0.0
      %203 = vmatpush1.msra.mxu0 0.0
      %204 = vmatprep.subr.mxu0 0.0
      %205 = vmatpush1.msra.mxu0 0.0
      %206 = vmatprep.subr.mxu0 0.0
      %207 = vmatpush1.msra.mxu0 0.0
      %208 = vmatprep.subr.mxu0 0.0
      %209 = vmatpush1.msra.mxu0 0.0
      %210 = vmatprep.subr.mxu0 0.0
      %211 = vmatpush1.msra.mxu0 0.0
      %212 = vmatprep.subr.mxu0 0.0
      %213 = vmatpush1.msra.mxu0 0.0
      %214 = vmatprep.subr.mxu0 0.0
      %215 = vmatpush1.msra.mxu0 0.0
      %216 = vmatprep.subr.mxu0 0.0
      %217 = vmatpush1.msra.mxu0 0.0
      %218 = vmatprep.subr.mxu0 0.0
      %219 = vmatpush1.msra.mxu0 0.0
      %220 = vmatprep.subr.mxu0 0.0
      %221 = vmatpush1.msra.mxu0 0.0
      %222 = vmatprep.subr.mxu0 0.0
      %223 = vmatpush1.msra.mxu0 0.0
      %224 = vmatprep.subr.mxu0 0.0
      %225 = vmatpush1.msra.mxu0 0.0
      %226 = vmatprep.subr.mxu0 0.0
      %227 = vmatpush1.msra.mxu0 0.0
      %228 = vmatprep.subr.mxu0 0.0
      %229 = vmatpush1.msra.mxu0 0.0
      %230 = vmatprep.subr.mxu0 0.0
      %231 = vmatpush1.msra.mxu0 0.0
      %232 = vmatprep.subr.mxu0 0.0
      %233 = vmatpush1.msra.mxu0 0.0
      %234 = vmatprep.subr.mxu0 0.0
      %235 = vmatpush1.msra.mxu0 0.0
      %236 = vmatprep.subr.mxu0 0.0
      %237 = vmatpush1.msra.mxu0 0.0
      %238 = vmatprep.subr.mxu0 0.0
      %239 = vmatpush1.msra.mxu0 0.0
      %240 = vmatprep.subr.mxu0 0.0
      %241 = vmatpush1.msra.mxu0 0.0
      %242 = vmatprep.subr.mxu0 0.0
      %243 = vmatpush1.msra.mxu0 0.0
      %244 = vmatprep.subr.mxu0 0.0
      %245 = vmatpush1.msra.mxu0 0.0
      %246 = vmatprep.subr.mxu0 0.0
      %247 = vmatpush1.msra.mxu0 0.0
      %248 = vmatprep.subr.mxu0 0.0
      %249 = vmatpush1.msra.mxu0 0.0
      %250 = vmatprep.subr.mxu0 0.0
      %251 = vmatpush1.msra.mxu0 0.0
      %252 = vmatprep.subr.mxu0 0.0
      %253 = vmatpush1.msra.mxu0 0.0
      %254 = vmatprep.subr.mxu0 0.0
      %255 = vmatpush1.msra.mxu0 0.0
      %256 = vmatprep.mubr.f32.mxu0 0.0
      %257 = vmatmul.mubr.f32.gmra.mrb[0].mxu0 %v190
      %v258 = vpop.f32.mrb[0].mxu0
      %v259 = vadd.f32 0.0, %v258
      %v260 = vpop.f32.mrb[0].mxu0
      %261 = vdwg.mxu0
      %262 = vst [vmem:[#allocation9] sm:$0x3] %v259
    $region37: #{tpu_custom_call.1} parent=1 // pred_fallthru
      _
    // Predicated region
    $region38: #{tpu_custom_call.1} parent=1 // pred_check
      _
    $region39: #{tpu_custom_call.1} parent=1 // pred_check_branch
      %264 = sbr.rel (0) target = $region41
    $region40: #{tpu_custom_call.1} parent=1 // pred_region
      %s266 = ssub.s32 32, 32
      %267 = vsyncadd [#allocation5], %s266
      %s269 = sshll.u32 [#allocation9], 4
      %s270 = int_to_ptr.vmem [resolvable:$true] %s269
      %272 = dma.vmem_to_hbm [thread:$0]  %s270, 32, %s4, [#allocation5]
    $region41: #{tpu_custom_call.1} parent=1 // pred_fallthru
      _
    // Predicated region
    $region42: #{tpu_custom_call.1} parent=1 // pred_check
      _
    $region43: #{tpu_custom_call.1} parent=1 // pred_check_branch
      %274 = sbr.rel (0) target = $region45
    $region44: #{tpu_custom_call.1} parent=1 // pred_region
      %275 = dma.done [#allocation5], 32
    $region45: #{tpu_custom_call.1} parent=1 // pred_fallthru
      _
    %276 = vsyncpa [#allocation4], 1
    %277 = vsyncpa [#allocation7], 1
    %278 = vsyncpa [#allocation5], 1

// kernel: tpu_custom_call.1
$region0: #{tpu_custom_call.1}
  #allocation0 [shape = 'u32[]', space=smem, size = 0x4, offset = 0x4, fixed_abs, tag = 'smem constant byte address 0x4 - core index']
  #allocation1 [shape = 'u32[144,128]{1,0:T(1,128)}', space=vmem, size = 0x12000, scoped, tag = 'internal scratch']
  #allocation2 [shape = 'f32[2,32]{1,0:T(2,128)}', space=vmem, size = 0x400, scoped, tag = 'scratch operand']
  %s0 = inlined_call_operand.hbm [shape: f32[2,8,32], index: 0, kind: input, shape index: {}]
  %s1 = inlined_call_operand.hbm [shape: f32[32,32], index: 1, kind: input, shape index: {}]
  %s2 = inlined_call_operand.vmem [shape: f32[1,32], index: 2, kind: input, shape index: {}]
  %s3 = inlined_call_operand.hbm [shape: f32[32,128], index: 3, kind: input, shape index: {}]
  %s4 = inlined_call_operand.hbm [shape: f32[2,128], index: 4, kind: output, shape index: {}]
  %s5 = sld [smem:[#allocation0]]
  $region46: #{tpu_custom_call.1} parent=0
    _
  %s7 = ssub.s32 1, %s5
  %s8 = scalar_select 0, %s7, %s5
  $region1: #{tpu_custom_call.1} parent=0
    #allocation3 [shape = 'u8[8192]{0}', space=vmem, size = 0x2000, scoped, tag = 'input window, operand 0, single buffered']
    #allocation4 [shape = 's32[1]{0}', space=sflag, size = 0x4, scoped, tag = 'scoped memory for tpu_custom_call.1']
    #allocation5 [shape = 's32[1]{0}', space=sflag, size = 0x4, scoped, tag = 'scoped memory for tpu_custom_call.1']
    #allocation6 [shape = 'u8[16384]{0}', space=vmem, size = 0x4000, scoped, tag = 'input window, operand 1, single buffered']
    #allocation7 [shape = 's32[1]{0}', space=sflag, size = 0x4, scoped, tag = 'scoped memory for tpu_custom_call.1']
    #allocation8 [shape = 'u8[16384]{0}', space=vmem, size = 0x4000, scoped, tag = 'input window, operand 3, single buffered']
    #allocation9 [shape = 'u8[1024]{0}', space=vmem, size = 0x400, scoped, tag = 'output window, operand 0, single buffered']
    %9 = vsyncpa [#allocation4], 0
    %10 = vsyncpa [#allocation7], 0
    %11 = vsyncpa [#allocation5], 0
    // Predicated region
    $region2: #{tpu_custom_call.1} parent=1 // pred_check
      _
    $region3: #{tpu_custom_call.1} parent=1 // pred_check_branch
      %13 = sbr.rel (0) target = $region5
    $region4: #{tpu_custom_call.1} parent=1 // pred_region
      %s15 = ssub.s32 256, 256
      %16 = vsyncadd [#allocation4], %s15
      %s17 = sshll.u32 [#allocation3], 4
      %s18 = int_to_ptr.vmem [resolvable:$true] %s17
      %23 = dma.hbm_to_vmem [thread:$0]  %s0, 256, %s18, [#allocation4], 128, 128, 8
    $region5: #{tpu_custom_call.1} parent=1 // pred_fallthru
      _
    // Predicated region
    $region6: #{tpu_custom_call.1} parent=1 // pred_check
      _
    $region7: #{tpu_custom_call.1} parent=1 // pred_check_branch
      %25 = sbr.rel (0) target = $region9
    $region8: #{tpu_custom_call.1} parent=1 // pred_region
      %s27 = ssub.s32 512, 512
      %28 = vsyncadd [#allocation7], %s27
      %s29 = sshll.u32 [#allocation6], 4
      %s30 = int_to_ptr.vmem [resolvable:$true] %s29
      %35 = dma.hbm_to_vmem [thread:$0]  %s1, 512, %s30, [#allocation7], 128, 128, 8
    $region9: #{tpu_custom_call.1} parent=1 // pred_fallthru
      _
    // Predicated region
    $region10: #{tpu_custom_call.1} parent=1 // pred_check
      _
    $region11: #{tpu_custom_call.1} parent=1 // pred_check_branch
      %37 = sbr.rel (0) target = $region13
    $region12: #{tpu_custom_call.1} parent=1 // pred_region
      _
    $region13: #{tpu_custom_call.1} parent=1 // pred_fallthru
      _
    // Predicated region
    $region14: #{tpu_custom_call.1} parent=1 // pred_check
      _
    $region15: #{tpu_custom_call.1} parent=1 // pred_check_branch
      %39 = sbr.rel (0) target = $region17
    $region16: #{tpu_custom_call.1} parent=1 // pred_region
      %s41 = ssub.s32 512, 512
      %42 = vsyncadd [#allocation7], %s41
      %s43 = sshll.u32 [#allocation8], 4
      %s44 = int_to_ptr.vmem [resolvable:$true] %s43
      %49 = dma.hbm_to_vmem [thread:$0]  %s3, 512, %s44, [#allocation7], 128, 128, 8
    $region17: #{tpu_custom_call.1} parent=1 // pred_fallthru
      _
    // Predicated region
    $region18: #{tpu_custom_call.1} parent=1 // pred_check
      _
    $region19: #{tpu_custom_call.1} parent=1 // pred_check_branch
      %51 = sbr.rel (0) target = $region21
    $region20: #{tpu_custom_call.1} parent=1 // pred_region
      %52 = dma.done [#allocation4], 256
    $region21: #{tpu_custom_call.1} parent=1 // pred_fallthru
      _
    // Predicated region
    $region22: #{tpu_custom_call.1} parent=1 // pred_check
      _
    $region23: #{tpu_custom_call.1} parent=1 // pred_check_branch
      %54 = sbr.rel (0) target = $region25
    $region24: #{tpu_custom_call.1} parent=1 // pred_region
      %55 = dma.done [#allocation7], 512
    $region25: #{tpu_custom_call.1} parent=1 // pred_fallthru
      _
    // Predicated region
    $region26: #{tpu_custom_call.1} parent=1 // pred_check
      _
    $region27: #{tpu_custom_call.1} parent=1 // pred_check_branch
      %57 = sbr.rel (0) target = $region29
    $region28: #{tpu_custom_call.1} parent=1 // pred_region
      %58 = dma.done [#allocation7], 512
    $region29: #{tpu_custom_call.1} parent=1 // pred_fallthru
      _
    %p59 = scmp.eq.s32.totalorder 0, 0
    // Predicated region
    $region30: #{tpu_custom_call.1} parent=1 // pred_check
      %p60 = pneg %p59
    $region31: #{tpu_custom_call.1} parent=1 // pred_check_branch
      %62 = sbr.rel (%p60) target = $region33
    $region32: #{tpu_custom_call.1} parent=1 // pred_region
      %vm63 = vcmask 254976
      %64 = vst.msk [vmem:[#allocation2] sm:$0x3] %vm63, 0.0
    $region33: #{tpu_custom_call.1} parent=1 // pred_fallthru
      _
    %v65 = vld [vmem:[#allocation2] sm:$0x3]
    %v66 = vld [vmem:[#allocation3] sm:$0xff]
    %v67 = vld [vmem:[#allocation3 + $0x8] sm:$0xff]
    %vm68 = vcmask 261120
    %v69 = vsel %vm68, %v66, 0.0
    %v70 = vrot.slane %v69, 4
    %v71 = vadd.f32 %v69, %v70
    %v72 = vrot.slane %v71, 2
    %v73 = vadd.f32 %v71, %v72
    %v74 = vrot.slane %v73, 1
    %v75 = vadd.f32 %v73, %v74
    %v76 = vsel %vm68, %v67, 0.0
    %v77 = vrot.slane %v76, 4
    %v78 = vadd.f32 %v76, %v77
    %v79 = vrot.slane %v78, 2
    %v80 = vadd.f32 %v78, %v79
    %v81 = vrot.slane %v80, 1
    %v82 = vadd.f32 %v80, %v81
    %vm85 = vcmask 1041409
    %v86 = vsel %vm85, %v82, %v75
    %v88 = vadd.f32 %v65, %v86
    %vm89 = vcmask 254976
    %90 = vst.msk [vmem:[#allocation2] sm:$0x3] %vm89, %v88
    // Predicated region
    $region34: #{tpu_custom_call.1} parent=1 // pred_check
      %p91 = pneg %p59
    $region35: #{tpu_custom_call.1} parent=1 // pred_check_branch
      %93 = sbr.rel (%p91) target = $region37
    $region36: #{tpu_custom_call.1} parent=1 // pred_region
      %v94 = vld [vmem:[#allocation2] sm:$0x3]
      %v95 = vmul.f32 %v94, 0.125
      %v96 = vld [vmem:[#allocation6] sm:$0xff]
      %v97 = vld [vmem:[#allocation6 + $0x8] sm:$0xff]
      %v98 = vld [vmem:[#allocation6 + $0x10] sm:$0xff]
      %v99 = vld [vmem:[#allocation6 + $0x18] sm:$0xff]
      %v100 = vld [vmem:[%s2] sm:$0x1]
      %v102 = vlaneseq
      %v103 = vshrl.u32 %v102, 7
      %v104 = vsub.s32 0, %v103
      %v105 = vrot.slane %v100, %v104
      %v108 = vsel %vm68, %v95, 0
      %110 = vmatprep.subr.mxu0 0.0
      %111 = vmatpush1.msra.mxu0 %v96
      %112 = vmatprep.subr.mxu0 0.0
      %113 = vmatpush1.msra.mxu0 %v97
      %114 = vmatprep.subr.mxu0 0.0
      %115 = vmatpush1.msra.mxu0 %v98
      %116 = vmatprep.subr.mxu0 0.0
      %117 = vmatpush1.msra.mxu0 %v99
      %118 = vmatprep.subr.mxu0 0.0
      %119 = vmatpush1.msra.mxu0 0.0
      %120 = vmatprep.subr.mxu0 0.0
      %121 = vmatpush1.msra.mxu0 0.0
      %122 = vmatprep.subr.mxu0 0.0
      %123 = vmatpush1.msra.mxu0 0.0
      %124 = vmatprep.subr.mxu0 0.0
      %125 = vmatpush1.msra.mxu0 0.0
      %126 = vmatprep.subr.mxu0 0.0
      %127 = vmatpush1.msra.mxu0 0.0
      %128 = vmatprep.subr.mxu0 0.0
      %129 = vmatpush1.msra.mxu0 0.0
      %130 = vmatprep.subr.mxu0 0.0
      %131 = vmatpush1.msra.mxu0 0.0
      %132 = vmatprep.subr.mxu0 0.0
      %133 = vmatpush1.msra.mxu0 0.0
      %134 = vmatprep.subr.mxu0 0.0
      %135 = vmatpush1.msra.mxu0 0.0
      %136 = vmatprep.subr.mxu0 0.0
      %137 = vmatpush1.msra.mxu0 0.0
      %138 = vmatprep.subr.mxu0 0.0
      %139 = vmatpush1.msra.mxu0 0.0
      %140 = vmatprep.subr.mxu0 0.0
      %141 = vmatpush1.msra.mxu0 0.0
      %142 = vmatprep.subr.mxu0 0.0
      %143 = vmatpush1.msra.mxu0 0.0
      %144 = vmatprep.subr.mxu0 0.0
      %145 = vmatpush1.msra.mxu0 0.0
      %146 = vmatprep.subr.mxu0 0.0
      %147 = vmatpush1.msra.mxu0 0.0
      %148 = vmatprep.subr.mxu0 0.0
      %149 = vmatpush1.msra.mxu0 0.0
      %150 = vmatprep.subr.mxu0 0.0
      %151 = vmatpush1.msra.mxu0 0.0
      %152 = vmatprep.subr.mxu0 0.0
      %153 = vmatpush1.msra.mxu0 0.0
      %154 = vmatprep.subr.mxu0 0.0
      %155 = vmatpush1.msra.mxu0 0.0
      %156 = vmatprep.subr.mxu0 0.0
      %157 = vmatpush1.msra.mxu0 0.0
      %158 = vmatprep.subr.mxu0 0.0
      %159 = vmatpush1.msra.mxu0 0.0
      %160 = vmatprep.subr.mxu0 0.0
      %161 = vmatpush1.msra.mxu0 0.0
      %162 = vmatprep.subr.mxu0 0.0
      %163 = vmatpush1.msra.mxu0 0.0
      %164 = vmatprep.subr.mxu0 0.0
      %165 = vmatpush1.msra.mxu0 0.0
      %166 = vmatprep.subr.mxu0 0.0
      %167 = vmatpush1.msra.mxu0 0.0
      %168 = vmatprep.subr.mxu0 0.0
      %169 = vmatpush1.msra.mxu0 0.0
      %170 = vmatprep.subr.mxu0 0.0
      %171 = vmatpush1.msra.mxu0 0.0
      %172 = vmatprep.subr.mxu0 0.0
      %173 = vmatpush1.msra.mxu0 0.0
      %174 = vmatprep.mubr.f32.mxu0 0.0
      %175 = vmatmul.mubr.f32.gmra.mrb[0].mxu0 %v108
      %v176 = vpop.f32.mrb[0].mxu0
      %v177 = vadd.f32 %v105, %v176
      %v178 = vpop.f32.mrb[0].mxu0
      %179 = vdwg.mxu0
      %v180 = vmul.f32 %v177, 0.5
      %v181 = vmul.f32 %v177, 0.70710677
      %v182 = verf.f32.pop %v181
      %v183 = vadd.f32 %v182, 1.0
      %v184 = vmul.f32 %v180, %v183
      %v185 = vld [vmem:[#allocation8] sm:$0xff]
      %v186 = vld [vmem:[#allocation8 + $0x8] sm:$0xff]
      %v187 = vld [vmem:[#allocation8 + $0x10] sm:$0xff]
      %v188 = vld [vmem:[#allocation8 + $0x18] sm:$0xff]
      %v190 = vsel %vm68, %v184, 0
      %192 = vmatprep.subr.mxu0 0.0
      %193 = vmatpush1.msra.mxu0 %v185
      %194 = vmatprep.subr.mxu0 0.0
      %195 = vmatpush1.msra.mxu0 %v186
      %196 = vmatprep.subr.mxu0 0.0
      %197 = vmatpush1.msra.mxu0 %v187
      %198 = vmatprep.subr.mxu0 0.0
      %199 = vmatpush1.msra.mxu0 %v188
      %200 = vmatprep.subr.mxu0 0.0
      %201 = vmatpush1.msra.mxu0 0.0
      %202 = vmatprep.subr.mxu0 0.0
      %203 = vmatpush1.msra.mxu0 0.0
      %204 = vmatprep.subr.mxu0 0.0
      %205 = vmatpush1.msra.mxu0 0.0
      %206 = vmatprep.subr.mxu0 0.0
      %207 = vmatpush1.msra.mxu0 0.0
      %208 = vmatprep.subr.mxu0 0.0
      %209 = vmatpush1.msra.mxu0 0.0
      %210 = vmatprep.subr.mxu0 0.0
      %211 = vmatpush1.msra.mxu0 0.0
      %212 = vmatprep.subr.mxu0 0.0
      %213 = vmatpush1.msra.mxu0 0.0
      %214 = vmatprep.subr.mxu0 0.0
      %215 = vmatpush1.msra.mxu0 0.0
      %216 = vmatprep.subr.mxu0 0.0
      %217 = vmatpush1.msra.mxu0 0.0
      %218 = vmatprep.subr.mxu0 0.0
      %219 = vmatpush1.msra.mxu0 0.0
      %220 = vmatprep.subr.mxu0 0.0
      %221 = vmatpush1.msra.mxu0 0.0
      %222 = vmatprep.subr.mxu0 0.0
      %223 = vmatpush1.msra.mxu0 0.0
      %224 = vmatprep.subr.mxu0 0.0
      %225 = vmatpush1.msra.mxu0 0.0
      %226 = vmatprep.subr.mxu0 0.0
      %227 = vmatpush1.msra.mxu0 0.0
      %228 = vmatprep.subr.mxu0 0.0
      %229 = vmatpush1.msra.mxu0 0.0
      %230 = vmatprep.subr.mxu0 0.0
      %231 = vmatpush1.msra.mxu0 0.0
      %232 = vmatprep.subr.mxu0 0.0
      %233 = vmatpush1.msra.mxu0 0.0
      %234 = vmatprep.subr.mxu0 0.0
      %235 = vmatpush1.msra.mxu0 0.0
      %236 = vmatprep.subr.mxu0 0.0
      %237 = vmatpush1.msra.mxu0 0.0
      %238 = vmatprep.subr.mxu0 0.0
      %239 = vmatpush1.msra.mxu0 0.0
      %240 = vmatprep.subr.mxu0 0.0
      %241 = vmatpush1.msra.mxu0 0.0
      %242 = vmatprep.subr.mxu0 0.0
      %243 = vmatpush1.msra.mxu0 0.0
      %244 = vmatprep.subr.mxu0 0.0
      %245 = vmatpush1.msra.mxu0 0.0
      %246 = vmatprep.subr.mxu0 0.0
      %247 = vmatpush1.msra.mxu0 0.0
      %248 = vmatprep.subr.mxu0 0.0
      %249 = vmatpush1.msra.mxu0 0.0
      %250 = vmatprep.subr.mxu0 0.0
      %251 = vmatpush1.msra.mxu0 0.0
      %252 = vmatprep.subr.mxu0 0.0
      %253 = vmatpush1.msra.mxu0 0.0
      %254 = vmatprep.subr.mxu0 0.0
      %255 = vmatpush1.msra.mxu0 0.0
      %256 = vmatprep.mubr.f32.mxu0 0.0
      %257 = vmatmul.mubr.f32.gmra.mrb[0].mxu0 %v190
      %v258 = vpop.f32.mrb[0].mxu0
      %v259 = vadd.f32 0.0, %v258
      %v260 = vpop.f32.mrb[0].mxu0
      %261 = vdwg.mxu0
      %262 = vst [vmem:[#allocation9] sm:$0x3] %v259
    $region37: #{tpu_custom_call.1} parent=1 // pred_fallthru
      _
    // Predicated region
    $region38: #{tpu_custom_call.1} parent=1 // pred_check
      _
    $region39: #{tpu_custom_call.1} parent=1 // pred_check_branch
      %264 = sbr.rel (0) target = $region41
    $region40: #{tpu_custom_call.1} parent=1 // pred_region
      %s266 = ssub.s32 32, 32
      %267 = vsyncadd [#allocation5], %s266
      %s269 = sshll.u32 [#allocation9], 4
      %s270 = int_to_ptr.vmem [resolvable:$true] %s269
      %272 = dma.vmem_to_hbm [thread:$0]  %s270, 32, %s4, [#allocation5]
    $region41: #{tpu_custom_call.1} parent=1 // pred_fallthru
      _
    // Predicated region
    $region42: #{tpu_custom_call.1} parent=1 // pred_check
      _
    $region43: #{tpu_custom_call.1} parent=1 // pred_check_branch
      %274 = sbr.rel (0) target = $region45
    $region44: #{tpu_custom_call.1} parent=1 // pred_region
      %275 = dma.done [#allocation5], 32
    $region45: #{tpu_custom_call.1} parent=1 // pred_fallthru
      _
    %276 = vsyncpa [#allocation4], 1
    %277 = vsyncpa [#allocation7], 1
    %278 = vsyncpa [#allocation5], 1

</llo_original>
